<compile_context>
chip_gen: v7x
topology: tpu7x:2x2x1
jax: 0.10.0
libtpu: 0.0.40
codegen_flags: <defaults>
</compile_context>

<pallas_src>
import jax
import jax.numpy as jnp
from jax.experimental import pallas as pl
from jax.experimental.pallas import tpu as pltpu


def _round_up(x, m):
    return ((x + m - 1) // m) * m


# ----------------------------- kernels --------------------------------------

def _linear_bias_single_k_kernel(x_ref, w_ref, b_ref, o_ref):
    # Whole K in one block: no accumulator, no phases.
    acc = jnp.dot(x_ref[...], w_ref[...], preferred_element_type=jnp.float32)
    o_ref[...] = (acc + b_ref[...]).astype(o_ref.dtype)


def _linear_bias_acc_out_kernel(x_ref, w_ref, b_ref, o_ref):
    # K tiled, f32 output: accumulate directly into the resident output tile.
    k = pl.program_id(2)
    p = jnp.dot(x_ref[...], w_ref[...], preferred_element_type=jnp.float32)

    @pl.when(k == 0)
    def _():
        o_ref[...] = p

    @pl.when(k > 0)
    def _():
        o_ref[...] += p

    @pl.when(k == pl.num_programs(2) - 1)
    def _():
        o_ref[...] += b_ref[...]          # (tm,1)+(tm,tn) broadcast on the VPU


def _linear_bias_acc_scratch_kernel(x_ref, w_ref, b_ref, o_ref, acc_ref):
    # K tiled, non-f32 output: f32 scratch accumulator, single cast epilogue.
    k = pl.program_id(2)
    p = jnp.dot(x_ref[...], w_ref[...], preferred_element_type=jnp.float32)

    @pl.when(k == 0)
    def _():
        acc_ref[...] = p

    @pl.when(k > 0)
    def _():
        acc_ref[...] += p

    @pl.when(k == pl.num_programs(2) - 1)
    def _():
        o_ref[...] = (acc_ref[...] + b_ref[...]).astype(o_ref.dtype)


# ----------------------------- wrapper ---------------------------------------

def example_model_forward(inputs, weights, bias, *,
                          compute_dtype=None,
                          tm_max=512, tn_max=512, tk_max=1024):
    B, K = inputs.shape
    K2, N = weights.shape
    assert K == K2
    Nb = bias.shape[0]
    assert bias.shape == (Nb, 1)
    # torch broadcasting rule for (B, N) + (Nb, 1)
    assert B == Nb or B == 1 or Nb == 1

    out_dtype = inputs.dtype

    # B == 1, Nb > 1: do the (1,K)@(K,N) matmul ONCE; broadcast the bias column
    # in plain XLA instead of replicating the activation Nb times.
    if B == 1 and Nb > 1:
        row = example_model_forward(
            inputs, weights, jnp.zeros((1, 1), jnp.float32),
            compute_dtype=compute_dtype,
            tm_max=tm_max, tn_max=tn_max, tk_max=tk_max)          # (1, N)
        return (row.astype(jnp.float32)
                + bias.astype(jnp.float32)).astype(out_dtype)     # (Nb, N)

    out_rows = B  # here Nb == B or Nb == 1
    bias_rows = jnp.broadcast_to(bias, (out_rows, 1)).astype(jnp.float32)

    # Optional reduced-precision MXU operands (accumulation stays f32).
    if compute_dtype is not None:
        x = inputs.astype(compute_dtype)
        w = weights.astype(compute_dtype)
    else:
        x, w = inputs, weights
    in_itemsize = jnp.dtype(x.dtype).itemsize

    # ---- tile sizes: full dim when it fits (no padding / masking); otherwise
    # (8,128)-aligned tiles and pad the array up to a tile multiple. -----------
    if out_rows <= tm_max:
        tm, M_pad = out_rows, out_rows
    else:
        tm = tm_max
        M_pad = _round_up(out_rows, tm)
    if N <= tn_max:
        tn, N_pad = N, N
    else:
        tn = tn_max
        N_pad = _round_up(N, tn)
    if K <= tk_max:
        tk, K_pad = K, K
    else:
        tk = tk_max
        K_pad = _round_up(K, tk)

    grid_m = M_pad // tm
    grid_n = N_pad // tn
    grid_k = K_pad // tk

    # v7x has 2 TensorCores: make sure a "parallel" axis has >= 2 blocks for
    # medium shapes that would otherwise fit one tile.
    if grid_m == 1 and grid_n == 1 and N >= 256:
        tn = _round_up(pl.cdiv(N, 2), 128)
        N_pad = _round_up(N, tn)
        grid_n = N_pad // tn

    # ---- pad only what actually needs padding (no-op for aligned shapes) ----
    if (M_pad, K_pad) != (out_rows, K):
        x = jnp.zeros((M_pad, K_pad), x.dtype).at[:out_rows, :K].set(x)
    if (K_pad, N_pad) != (K, N):
        # TODO(synk): for a real model, pre-pad the (parameter) weights once
        # outside the forward instead of on every call.
        w = jnp.zeros((K_pad, N_pad), w.dtype).at[:K, :N].set(w)
    if M_pad != out_rows:
        bias_rows = (jnp.zeros((M_pad, 1), jnp.float32)
                     .at[:out_rows, :].set(bias_rows))

    out_itemsize = jnp.dtype(out_dtype).itemsize
    cost = pl.CostEstimate(
        flops=2 * M_pad * K_pad * N_pad,
        transcendentals=0,
        bytes_accessed=int(grid_n * M_pad * K_pad * in_itemsize
                           + grid_m * K_pad * N_pad * in_itemsize
                           + M_pad * N_pad * out_itemsize
                           + grid_n * M_pad * 4),
    )

    # VMEM budget: double-buffered inputs/outputs + f32 accumulator, 2x
    # headroom, clamped to [32, 64] MiB so the config also fits v7x (64 MiB).
    vmem_est = (2 * (tm * tk + tk * tn) * in_itemsize
                + 2 * tm * tn * out_itemsize
                + tm * tn * 4
                + 4 * tm * 4)
    vmem_limit = int(min(64 * 1024 * 1024, max(32 * 1024 * 1024, 2 * vmem_est)))

    if grid_k == 1:
        kernel = _linear_bias_single_k_kernel
        grid = (grid_m, grid_n)
        in_specs = [
            pl.BlockSpec((tm, tk), lambda i, j: (i, 0)),
            pl.BlockSpec((tk, tn), lambda i, j: (0, j)),
            pl.BlockSpec((tm, 1), lambda i, j: (i, 0)),
        ]
        out_specs = pl.BlockSpec((tm, tn), lambda i, j: (i, j))
        scratch_shapes = []
        dim_sem = ("parallel", "parallel")
    else:
        grid = (grid_m, grid_n, grid_k)
        in_specs = [
            pl.BlockSpec((tm, tk), lambda i, j, k: (i, k)),
            pl.BlockSpec((tk, tn), lambda i, j, k: (k, j)),
            pl.BlockSpec((tm, 1), lambda i, j, k: (i, 0)),
        ]
        out_specs = pl.BlockSpec((tm, tn), lambda i, j, k: (i, j))
        dim_sem = ("parallel", "parallel", "arbitrary")
        if jnp.dtype(out_dtype) == jnp.float32:
            kernel = _linear_bias_acc_out_kernel
            scratch_shapes = []
        else:
            kernel = _linear_bias_acc_scratch_kernel
            scratch_shapes = [pltpu.VMEM((tm, tn), jnp.float32)]

    out = pl.pallas_call(
        kernel,
        out_shape=jax.ShapeDtypeStruct((M_pad, N_pad), out_dtype),
        grid_spec=pltpu.PrefetchScalarGridSpec(
            num_scalar_prefetch=0,
            grid=grid,
            in_specs=in_specs,
            out_specs=out_specs,
            scratch_shapes=scratch_shapes,
        ),
        compiler_params=pltpu.CompilerParams(
            dimension_semantics=dim_sem,
            vmem_limit_bytes=vmem_limit,
        ),
        cost_estimate=cost,
    )(x, w, bias_rows)

    if (M_pad, N_pad) != (out_rows, N):
        out = out[:out_rows, :N]
    return out


if __name__ == "__main__":
    # Shapes implied by the module: a plain linear layer, batch == out_features
    # so the torch (B, N) + (N, 1) broadcast is legal.
    in_features = 32
    out_features = 8
    batch = 8

    key = jax.random.PRNGKey(0)
    k_x, k_w, k_b, k_x2, k_w2, k_b2 = jax.random.split(key, 6)

    # Deterministic params mirroring __init__:
    #   weights = torch.rand((in_features, out_features)) -> uniform [0, 1)
    #   bias    = torch.zeros((out_features, 1))
    weights = jax.random.uniform(k_w, (in_features, out_features), dtype=jnp.float32)
    bias = jnp.zeros((out_features, 1), dtype=jnp.float32)
    inputs = jax.random.normal(k_x, (batch, in_features), dtype=jnp.float32)

    # Zero-bias (fresh-init) path -- single-tile fast path, no padding.
    out = jax.block_until_ready(example_model_forward(inputs, weights, bias))
    ref = inputs @ weights + bias
    assert out.shape == ref.shape
    assert jnp.allclose(out, ref, atol=1e-5, rtol=1e-5)

    # Non-zero bias (trained parameter) path.
    bias2 = jax.random.normal(k_b, (out_features, 1), dtype=jnp.float32)
    out2 = jax.block_until_ready(example_model_forward(inputs, weights, bias2))
    ref2 = inputs @ weights + bias2
    assert jnp.allclose(out2, ref2, atol=1e-5, rtol=1e-5)

    # Optional bf16 MXU operands (f32 accumulate) -- looser tolerance.
    out3 = jax.block_until_ready(
        example_model_forward(inputs, weights, bias2, compute_dtype=jnp.bfloat16))
    assert jnp.allclose(out3, ref2, atol=1e-1, rtol=5e-2)

    # Larger shape exercising the K-tiled accumulate-into-output path and the
    # TensorCore-split heuristic (grid gets >= 2 parallel blocks).
    M2, K2_, N2 = 256, 2048, 256
    x2 = jax.random.normal(k_x2, (M2, K2_), dtype=jnp.float32)
    w2 = jax.random.uniform(k_w2, (K2_, N2), dtype=jnp.float32)
    b2 = jax.random.normal(k_b2, (M2, 1), dtype=jnp.float32)  # Nb == B == 256
    out4 = jax.block_until_ready(example_model_forward(x2, w2, b2))
    ref4 = jnp.dot(x2, w2, precision=jax.lax.Precision.HIGHEST,
                   preferred_element_type=jnp.float32) + b2
    assert out4.shape == ref4.shape
    assert jnp.allclose(out4, ref4, atol=5e-2, rtol=1e-2)

    print("KERNEL_OK")
</pallas_src>

<mosaic_0001>
module attributes {stable_mosaic.version = 11 : i64} {
  func.func @_linear_bias_single_k_kernel(%arg0: i32, %arg1: i32, %arg2: memref<8x32xf32, #tpu.memory_space<vmem>>, %arg3: memref<32x8xf32, #tpu.memory_space<vmem>>, %arg4: memref<8x1xf32, #tpu.memory_space<vmem>>, %arg5: memref<8x8xf32, #tpu.memory_space<vmem>>) attributes {dimension_semantics = [#tpu.dimension_semantics<parallel>, #tpu.dimension_semantics<parallel>], iteration_bounds = array<i64: 1, 1>, scalar_prefetch = 0 : i64, scratch_operands = 0 : i64, tpu.core_type = #tpu.core_type<tc>, window_params = [{transform_indices = @transform_0, window_bounds = array<i64: 8, 32>}, {transform_indices = @transform_1, window_bounds = array<i64: 32, 8>}, {transform_indices = @transform_2, window_bounds = array<i64: 8, 1>}, {transform_indices = @transform_3, window_bounds = array<i64: 8, 8>}]} {
    %c0 = arith.constant 0 : index
    %c0_0 = arith.constant 0 : index
    %0 = vector.load %arg2[%c0, %c0_0] : memref<8x32xf32, #tpu.memory_space<vmem>>, vector<8x32xf32>
    %c0_1 = arith.constant 0 : index
    %c0_2 = arith.constant 0 : index
    %1 = vector.load %arg3[%c0_1, %c0_2] : memref<32x8xf32, #tpu.memory_space<vmem>>, vector<32x8xf32>
    %cst = arith.constant dense<0.000000e+00> : vector<8x8xf32>
    %2 = tpu.matmul %0, %1, %cst {dimension_numbers = #tpu.dot_dimension_numbers<[1], [0], [0], [1], [0, 0, 1, 1], [], []>} : vector<8x32xf32>, vector<32x8xf32>, vector<8x8xf32> -> vector<8x8xf32>
    %c0_3 = arith.constant 0 : index
    %c0_4 = arith.constant 0 : index
    %3 = vector.load %arg4[%c0_3, %c0_4] : memref<8x1xf32, #tpu.memory_space<vmem>>, vector<8x1xf32>
    %4 = vector.broadcast %3 : vector<8x1xf32> to vector<8x8xf32>
    %5 = arith.addf %2, %4 : vector<8x8xf32>
    %c0_5 = arith.constant 0 : index
    %c0_6 = arith.constant 0 : index
    %6 = vector.load %arg5[%c0_5, %c0_6] : memref<8x8xf32, #tpu.memory_space<vmem>>, vector<8x8xf32>
    tpu.vector_store %arg5[%c0_5, %c0_6], %5 {strides = array<i32>} : memref<8x8xf32, #tpu.memory_space<vmem>>, vector<8x8xf32>,
    return
  }
  func.func @transform_0(%arg0: i32, %arg1: i32) -> (i32, i32) {
    %c0_i32 = arith.constant 0 : i32
    %c0_i32_0 = arith.constant 0 : i32
    return %arg0, %c0_i32 : i32, i32
  }
  func.func @transform_1(%arg0: i32, %arg1: i32) -> (i32, i32) {
    %c0_i32 = arith.constant 0 : i32
    %c0_i32_0 = arith.constant 0 : i32
    return %c0_i32, %arg1 : i32, i32
  }
  func.func @transform_2(%arg0: i32, %arg1: i32) -> (i32, i32) {
    %c0_i32 = arith.constant 0 : i32
    %c0_i32_0 = arith.constant 0 : i32
    return %arg0, %c0_i32 : i32, i32
  }
  func.func @transform_3(%arg0: i32, %arg1: i32) -> (i32, i32) {
    %c0_i32 = arith.constant 0 : i32
    return %arg0, %arg1 : i32, i32
  }
}

</mosaic_0001>

<llo_original>
// kernel: tpu_custom_call.1
$region0: #{tpu_custom_call.1}
  #allocation0 [shape = 'u32[]', space=smem, size = 0x4, offset = 0x4, fixed_abs, tag = 'smem constant byte address 0x4 - core index']
  #allocation1 [shape = 'u32[144,128]{1,0:T(1,128)}', space=vmem, size = 0x12000, scoped, tag = 'internal scratch']
  %s0 = inlined_call_operand.vmem [shape: f32[8,32], index: 0, kind: input, shape index: {}]
  %s1 = inlined_call_operand.vmem [shape: f32[32,8], index: 1, kind: input, shape index: {}]
  %s2 = inlined_call_operand.vmem [shape: f32[8,1], index: 2, kind: input, shape index: {}]
  %s3 = inlined_call_operand.hbm [shape: f32[8,8], index: 3, kind: output, shape index: {}]
  %s4 = sld [smem:[#allocation0]]
  $region22: #{tpu_custom_call.1} parent=0
    _
  %s6 = ssub.s32 1, %s4
  %s7 = scalar_select 0, %s6, %s4
  $region1: #{tpu_custom_call.1} parent=0
    #allocation2 [shape = 'u8[4096]{0}', space=vmem, size = 0x1000, scoped, tag = 'output window, operand 0, single buffered']
    #allocation3 [shape = 's32[1]{0}', space=sflag, size = 0x4, scoped, tag = 'scoped memory for tpu_custom_call.1']
    %8 = vsyncpa [#allocation3], 0
    // Predicated region
    $region2: #{tpu_custom_call.1} parent=1 // pred_check
      _
    $region3: #{tpu_custom_call.1} parent=1 // pred_check_branch
      %10 = sbr.rel (0) target = $region5
    $region4: #{tpu_custom_call.1} parent=1 // pred_region
      _
    $region5: #{tpu_custom_call.1} parent=1 // pred_fallthru
      _
    // Predicated region
    $region6: #{tpu_custom_call.1} parent=1 // pred_check
      _
    $region7: #{tpu_custom_call.1} parent=1 // pred_check_branch
      %12 = sbr.rel (0) target = $region9
    $region8: #{tpu_custom_call.1} parent=1 // pred_region
      _
    $region9: #{tpu_custom_call.1} parent=1 // pred_fallthru
      _
    // Predicated region
    $region10: #{tpu_custom_call.1} parent=1 // pred_check
      _
    $region11: #{tpu_custom_call.1} parent=1 // pred_check_branch
      %14 = sbr.rel (0) target = $region13
    $region12: #{tpu_custom_call.1} parent=1 // pred_region
      _
    $region13: #{tpu_custom_call.1} parent=1 // pred_fallthru
      _
    %v15 = vld [vmem:[%s0] sm:$0xff]
    %v16 = vld [vmem:[%s1] sm:$0xff]
    %v17 = vld [vmem:[%s1 + $0x8] sm:$0xff]
    %v18 = vld [vmem:[%s1 + $0x10] sm:$0xff]
    %v19 = vld [vmem:[%s1 + $0x18] sm:$0xff]
    %v20 = vld [vmem:[%s2] sm:$0xff]
    %22 = vset.pattern.permute.xlu0 0
    %23 = vperm.xlu0 %22, %v20
    %v24 = vpop.permute.xlu0 %23
    %vm26 = vcmask 261120
    %v28 = vsel %vm26, %v15, 0
    %30 = vmatprep.subr.mxu0 0.0
    %31 = vmatpush1.msra.mxu0 %v16
    %32 = vmatprep.subr.mxu0 0.0
    %33 = vmatpush1.msra.mxu0 %v17
    %34 = vmatprep.subr.mxu0 0.0
    %35 = vmatpush1.msra.mxu0 %v18
    %36 = vmatprep.subr.mxu0 0.0
    %37 = vmatpush1.msra.mxu0 %v19
    %38 = vmatprep.subr.mxu0 0.0
    %39 = vmatpush1.msra.mxu0 0.0
    %40 = vmatprep.subr.mxu0 0.0
    %41 = vmatpush1.msra.mxu0 0.0
    %42 = vmatprep.subr.mxu0 0.0
    %43 = vmatpush1.msra.mxu0 0.0
    %44 = vmatprep.subr.mxu0 0.0
    %45 = vmatpush1.msra.mxu0 0.0
    %46 = vmatprep.subr.mxu0 0.0
    %47 = vmatpush1.msra.mxu0 0.0
    %48 = vmatprep.subr.mxu0 0.0
    %49 = vmatpush1.msra.mxu0 0.0
    %50 = vmatprep.subr.mxu0 0.0
    %51 = vmatpush1.msra.mxu0 0.0
    %52 = vmatprep.subr.mxu0 0.0
    %53 = vmatpush1.msra.mxu0 0.0
    %54 = vmatprep.subr.mxu0 0.0
    %55 = vmatpush1.msra.mxu0 0.0
    %56 = vmatprep.subr.mxu0 0.0
    %57 = vmatpush1.msra.mxu0 0.0
    %58 = vmatprep.subr.mxu0 0.0
    %59 = vmatpush1.msra.mxu0 0.0
    %60 = vmatprep.subr.mxu0 0.0
    %61 = vmatpush1.msra.mxu0 0.0
    %62 = vmatprep.subr.mxu0 0.0
    %63 = vmatpush1.msra.mxu0 0.0
    %64 = vmatprep.subr.mxu0 0.0
    %65 = vmatpush1.msra.mxu0 0.0
    %66 = vmatprep.subr.mxu0 0.0
    %67 = vmatpush1.msra.mxu0 0.0
    %68 = vmatprep.subr.mxu0 0.0
    %69 = vmatpush1.msra.mxu0 0.0
    %70 = vmatprep.subr.mxu0 0.0
    %71 = vmatpush1.msra.mxu0 0.0
    %72 = vmatprep.subr.mxu0 0.0
    %73 = vmatpush1.msra.mxu0 0.0
    %74 = vmatprep.subr.mxu0 0.0
    %75 = vmatpush1.msra.mxu0 0.0
    %76 = vmatprep.subr.mxu0 0.0
    %77 = vmatpush1.msra.mxu0 0.0
    %78 = vmatprep.subr.mxu0 0.0
    %79 = vmatpush1.msra.mxu0 0.0
    %80 = vmatprep.subr.mxu0 0.0
    %81 = vmatpush1.msra.mxu0 0.0
    %82 = vmatprep.subr.mxu0 0.0
    %83 = vmatpush1.msra.mxu0 0.0
    %84 = vmatprep.subr.mxu0 0.0
    %85 = vmatpush1.msra.mxu0 0.0
    %86 = vmatprep.subr.mxu0 0.0
    %87 = vmatpush1.msra.mxu0 0.0
    %88 = vmatprep.subr.mxu0 0.0
    %89 = vmatpush1.msra.mxu0 0.0
    %90 = vmatprep.subr.mxu0 0.0
    %91 = vmatpush1.msra.mxu0 0.0
    %92 = vmatprep.subr.mxu0 0.0
    %93 = vmatpush1.msra.mxu0 0.0
    %94 = vmatprep.mubr.f32.mxu0 0.0
    %95 = vmatmul.mubr.f32.gmra.mrb[0].mxu0 %v28
    %v96 = vpop.f32.mrb[0].mxu0
    %v97 = vadd.f32 %v24, %v96
    %v98 = vpop.f32.mrb[0].mxu0
    %99 = vdwg.mxu0
    %vm100 = vcmask 64512
    %101 = vst.msk [vmem:[#allocation2] sm:$0xff] %vm100, %v97
    // Predicated region
    $region14: #{tpu_custom_call.1} parent=1 // pred_check
      _
    $region15: #{tpu_custom_call.1} parent=1 // pred_check_branch
      %103 = sbr.rel (0) target = $region17
    $region16: #{tpu_custom_call.1} parent=1 // pred_region
      %s105 = ssub.s32 128, 128
      %106 = vsyncadd [#allocation3], %s105
      %s108 = sshll.u32 [#allocation2], 4
      %s109 = int_to_ptr.vmem [resolvable:$true] %s108
      %111 = dma.vmem_to_hbm [thread:$0]  %s109, 128, %s3, [#allocation3]
    $region17: #{tpu_custom_call.1} parent=1 // pred_fallthru
      _
    // Predicated region
    $region18: #{tpu_custom_call.1} parent=1 // pred_check
      _
    $region19: #{tpu_custom_call.1} parent=1 // pred_check_branch
      %113 = sbr.rel (0) target = $region21
    $region20: #{tpu_custom_call.1} parent=1 // pred_region
      %114 = dma.done [#allocation3], 128
    $region21: #{tpu_custom_call.1} parent=1 // pred_fallthru
      _
    %115 = vsyncpa [#allocation3], 1

</llo_original>
